<compile_context>
chip_gen: v7x
topology: tpu7x:2x2x1
jax: 0.10.0
libtpu: 0.0.40
codegen_flags: <defaults>
</compile_context>

<pallas_src>
import jax
import jax.numpy as jnp
from jax.experimental import pallas as pl
from jax.experimental.pallas import tpu as pltpu


def _round_up(n, m):
    return ((n + m - 1) // m) * m


def _anfis_kernel(xt_ref, lhs_ref, bias_ref, o_ref):
    # xt:   (I, TB)      batch tile, batch on the 128-lane axis
    # lhs:  (2*Rp, Kp)   MXU coefficients: rows 0:Rp -> log-firing, Rp:2Rp -> consequent
    # bias: (2*Rp, 1)    per-row constant terms
    # o:    (1, TB)      lane-dense sigmoid output tile
    xt = xt_ref[...].astype(jnp.float32)
    lhs = lhs_ref[...].astype(jnp.float32)
    bias = bias_ref[...].astype(jnp.float32)

    n_in, tb = xt.shape
    k_pad = lhs.shape[1]
    r_pad = lhs.shape[0] // 2

    # RHS = [x*x ; x] (plus zero pad rows); cheap VPU work, stays in vregs.
    parts = [xt * xt, xt]
    pad_rows = k_pad - 2 * n_in
    if pad_rows:
        parts.append(jnp.zeros((pad_rows, tb), jnp.float32))
    rhs = jnp.concatenate(parts, axis=0)                               # (Kp, TB)

    # One small-LHS f32 matmul on the MXU; bias is a lane-broadcast add.
    res = jnp.dot(lhs, rhs, preferred_element_type=jnp.float32) + bias  # (2*Rp, TB)

    firing = jnp.exp(res[:r_pad, :])                                   # (Rp, TB)  EUP
    rule_out = res[r_pad:, :]                                          # (Rp, TB)

    # Fused normalization: y = sum(f * rule) / (sum(f) + eps) per batch column.
    s_f = jnp.sum(firing, axis=0, keepdims=True)                       # (1, TB)  sublane reduce
    s_fr = jnp.sum(firing * rule_out, axis=0, keepdims=True)           # (1, TB)
    y = s_fr * pl.reciprocal(s_f + 1e-8, approx=False)

    o_ref[...] = jax.nn.sigmoid(y).astype(o_ref.dtype)


def anfis_forward(x, mu, sigma, consequents, *, block_b=8192):
    """x: (B, n_inputs); mu/sigma: (n_rules, n_inputs); consequents: (n_rules, n_inputs+1).

    Returns sigmoid output of shape (B, 1), matching the PyTorch module.
    """
    B, n_inputs = x.shape
    n_rules = mu.shape[0]

    x = x.astype(jnp.float32)
    mu_f = mu.astype(jnp.float32)
    inv_sig = 1.0 / jnp.maximum(sigma.astype(jnp.float32), 0.001)       # clamp + recip hoisted
    a2 = inv_sig * inv_sig
    cons_w = consequents[:, :n_inputs].astype(jnp.float32)              # (R, I)
    cons_b = consequents[:, n_inputs:n_inputs + 1].astype(jnp.float32)  # (R, 1)

    # Quadratic expansion of the Gaussian exponent (coefficients for RHS = [x^2 ; x]):
    #   -0.5*sum_i ((x_i-mu)/sig)^2 = sum_i (-0.5*a2)*x_i^2 + (a2*mu)*x_i - 0.5*sum_i a2*mu^2
    gauss_lin = jnp.concatenate([-0.5 * a2, a2 * mu_f], axis=1)                      # (R, 2I)
    cons_lin = jnp.concatenate([jnp.zeros((n_rules, n_inputs), jnp.float32),
                                cons_w], axis=1)                                     # (R, 2I)
    gauss_bias = -0.5 * jnp.sum(a2 * mu_f * mu_f, axis=1, keepdims=True)             # (R, 1)

    r_pad = _round_up(n_rules, 8)
    k_pad = _round_up(2 * n_inputs, 8)

    lhs = jnp.zeros((2 * r_pad, k_pad), jnp.float32)
    lhs = lhs.at[:n_rules, :2 * n_inputs].set(gauss_lin)
    lhs = lhs.at[r_pad:r_pad + n_rules, :2 * n_inputs].set(cons_lin)

    bias = jnp.zeros((2 * r_pad, 1), jnp.float32)
    bias = bias.at[:n_rules, :].set(gauss_bias)
    bias = bias.at[r_pad:r_pad + n_rules, :].set(cons_b)
    if r_pad != n_rules:
        # Padded rules must not fire: huge negative log-firing -> exp underflows to 0.
        bias = bias.at[n_rules:r_pad, :].set(-1e30)

    # Layout plumbing; TODO(synk): for very large B, produce x batch-on-lanes upstream
    # so this separate XLA transpose pass over x disappears.
    xt = x.T                                                                          # (I, B)

    # Batch tile: multiple of 128 lanes, capped by block_b, chosen so the grid has
    # >= 2 steps whenever B > 128 (lets ("parallel",) shard across both v7x TCs).
    tb_cap = _round_up(max(int(block_b), 128), 128)
    tb = min(tb_cap, _round_up(max((B + 1) // 2, 1), 128))
    grid = (pl.cdiv(B, tb),)

    cost = pl.CostEstimate(
        flops=int(B) * (4 * r_pad * k_pad + 8 * r_pad + 16),
        transcendentals=int(B) * (r_pad + 2),
        bytes_accessed=int(B) * (4 * n_inputs + 4) + 8 * r_pad * (k_pad + 1) * 4,
    )

    out = pl.pallas_call(
        _anfis_kernel,
        out_shape=jax.ShapeDtypeStruct((1, B), jnp.float32),
        grid_spec=pltpu.PrefetchScalarGridSpec(
            num_scalar_prefetch=0,
            grid=grid,
            in_specs=[
                pl.BlockSpec((n_inputs, tb), lambda b: (0, b)),        # streamed x tile
                pl.BlockSpec((2 * r_pad, k_pad), lambda b: (0, 0)),    # resident MXU coeffs
                pl.BlockSpec((2 * r_pad, 1), lambda b: (0, 0)),        # resident bias column
            ],
            out_specs=pl.BlockSpec((1, tb), lambda b: (0, b)),         # lane-dense output
        ),
        compiler_params=pltpu.CompilerParams(
            dimension_semantics=("parallel",),                         # megacore sharding on v7x
        ),
        cost_estimate=cost,
    )(xt, lhs, bias)

    return out.reshape(B, 1)


def anfis_reference(x, mu, sigma, consequents):
    """Pure-JAX reference mirroring the PyTorch module exactly."""
    B = x.shape[0]
    sig = jnp.maximum(sigma[None, :, :], 0.001)
    gauss = jnp.exp(-0.5 * ((x[:, None, :] - mu[None, :, :]) / sig) ** 2)
    firing = jnp.prod(gauss, axis=2)
    norm_firing = firing / (jnp.sum(firing, axis=1, keepdims=True) + 1e-8)
    x_aug = jnp.concatenate([x, jnp.ones((B, 1), x.dtype)], axis=1)
    rule_out = x_aug @ consequents.T
    y = jnp.sum(norm_firing * rule_out, axis=1, keepdims=True)
    return jax.nn.sigmoid(y)


if __name__ == "__main__":
    n_inputs = 4
    n_rules = 16
    batch = 512

    key = jax.random.PRNGKey(0)
    k_mu, k_sigma, k_cons, k_x = jax.random.split(key, 4)

    # Deterministic synthetic checkpoint.  sigma gets a 0.05 floor so the f32
    # expanded-square (MXU) formulation stays tight against the reference; widths
    # below that are numerically degenerate in f32 for the original model as well.
    mu = jax.random.normal(k_mu, (n_rules, n_inputs), jnp.float32)
    sigma = jax.random.uniform(k_sigma, (n_rules, n_inputs), jnp.float32,
                               minval=0.05, maxval=1.0)
    consequents = jax.random.normal(k_cons, (n_rules, n_inputs + 1), jnp.float32)
    x = jax.random.normal(k_x, (batch, n_inputs), jnp.float32)

    # Main batch: grid of 2 "parallel" steps (tb = 256) -> both v7x TCs active.
    out = jax.block_until_ready(anfis_forward(x, mu, sigma, consequents))
    ref = anfis_reference(x, mu, sigma, consequents)
    assert out.shape == (batch, 1)
    assert jnp.allclose(out, ref, atol=2e-3, rtol=2e-3), float(jnp.max(jnp.abs(out - ref)))

    # Ragged batch (not a multiple of 128): multi-step grid with a masked tail tile.
    x_mid = jax.random.normal(jax.random.PRNGKey(1), (300, n_inputs), jnp.float32)
    out_mid = jax.block_until_ready(anfis_forward(x_mid, mu, sigma, consequents))
    ref_mid = anfis_reference(x_mid, mu, sigma, consequents)
    assert out_mid.shape == (300, 1)
    assert jnp.allclose(out_mid, ref_mid, atol=2e-3, rtol=2e-3)

    # Tiny batch (< one 128-lane tile): single masked block.
    x_small = jax.random.normal(jax.random.PRNGKey(2), (8, n_inputs), jnp.float32)
    out_small = jax.block_until_ready(anfis_forward(x_small, mu, sigma, consequents))
    ref_small = anfis_reference(x_small, mu, sigma, consequents)
    assert out_small.shape == (8, 1)
    assert jnp.allclose(out_small, ref_small, atol=2e-3, rtol=2e-3)

    print("KERNEL_OK")
</pallas_src>

<mosaic_0001>
module attributes {stable_mosaic.version = 11 : i64} {
  func.func @_anfis_kernel(%arg0: i32, %arg1: memref<4x256xf32, #tpu.memory_space<vmem>>, %arg2: memref<32x8xf32, #tpu.memory_space<vmem>>, %arg3: memref<32x1xf32, #tpu.memory_space<vmem>>, %arg4: memref<1x256xf32, #tpu.memory_space<vmem>>) attributes {dimension_semantics = [#tpu.dimension_semantics<parallel>], iteration_bounds = array<i64: 2>, scalar_prefetch = 0 : i64, scratch_operands = 0 : i64, tpu.core_type = #tpu.core_type<tc>, window_params = [{transform_indices = @transform_0, window_bounds = array<i64: 4, 256>}, {pipeline_mode = #tpu.pipeline_mode<synchronous>, transform_indices = @transform_1, window_bounds = array<i64: 32, 8>}, {pipeline_mode = #tpu.pipeline_mode<synchronous>, transform_indices = @transform_2, window_bounds = array<i64: 32, 1>}, {transform_indices = @transform_3, window_bounds = array<i64: 1, 256>}]} {
    %c0 = arith.constant 0 : index
    %c0_0 = arith.constant 0 : index
    %0 = vector.load %arg1[%c0, %c0_0] : memref<4x256xf32, #tpu.memory_space<vmem>>, vector<4x256xf32>
    %c0_1 = arith.constant 0 : index
    %c0_2 = arith.constant 0 : index
    %1 = vector.load %arg2[%c0_1, %c0_2] : memref<32x8xf32, #tpu.memory_space<vmem>>, vector<32x8xf32>
    %c0_3 = arith.constant 0 : index
    %c0_4 = arith.constant 0 : index
    %2 = vector.load %arg3[%c0_3, %c0_4] : memref<32x1xf32, #tpu.memory_space<vmem>>, vector<32x1xf32>
    %3 = arith.mulf %0, %0 : vector<4x256xf32>
    %4 = tpu.concatenate %3, %0 in 0 : vector<4x256xf32>, vector<4x256xf32> -> vector<8x256xf32>
    %cst = arith.constant dense<0.000000e+00> : vector<32x256xf32>
    %5 = tpu.matmul %1, %4, %cst {dimension_numbers = #tpu.dot_dimension_numbers<[1], [0], [0], [1], [0, 0, 1, 1], [], []>} : vector<32x8xf32>, vector<8x256xf32>, vector<32x256xf32> -> vector<32x256xf32>
    %6 = vector.broadcast %2 : vector<32x1xf32> to vector<32x256xf32>
    %7 = arith.addf %5, %6 : vector<32x256xf32>
    %8 = vector.extract_strided_slice %7 {offsets = [0, 0], sizes = [16, 256], strides = [1, 1]} : vector<32x256xf32> to vector<16x256xf32>
    %9 = math.exp %8 : vector<16x256xf32>
    %10 = vector.extract_strided_slice %7 {offsets = [16, 0], sizes = [16, 256], strides = [1, 1]} : vector<32x256xf32> to vector<16x256xf32>
    %cst_5 = arith.constant dense<0.000000e+00> : vector<256xf32>
    %11 = vector.multi_reduction <add>, %9, %cst_5 [0] : vector<16x256xf32> to vector<256xf32>
    %12 = vector.shape_cast %11 : vector<256xf32> to vector<1x256xf32>
    %13 = arith.mulf %9, %10 : vector<16x256xf32>
    %cst_6 = arith.constant dense<0.000000e+00> : vector<256xf32>
    %14 = vector.multi_reduction <add>, %13, %cst_6 [0] : vector<16x256xf32> to vector<256xf32>
    %15 = vector.shape_cast %14 : vector<256xf32> to vector<1x256xf32>
    %cst_7 = arith.constant 9.99999993E-9 : f32
    %16 = vector.broadcast %cst_7 : f32 to vector<1x256xf32>
    %17 = arith.addf %12, %16 : vector<1x256xf32>
    %18 = tpu.reciprocal %17 : vector<1x256xf32> -> vector<1x256xf32>
    %19 = arith.mulf %15, %18 : vector<1x256xf32>
    %20 = arith.negf %19 : vector<1x256xf32>
    %21 = math.exp %20 : vector<1x256xf32>
    %cst_8 = arith.constant 1.000000e+00 : f32
    %22 = vector.broadcast %cst_8 : f32 to vector<1x256xf32>
    %23 = arith.addf %22, %21 : vector<1x256xf32>
    %24 = arith.divf %22, %23 : vector<1x256xf32>
    %c0_9 = arith.constant 0 : index
    %c0_10 = arith.constant 0 : index
    %25 = vector.load %arg4[%c0_9, %c0_10] : memref<1x256xf32, #tpu.memory_space<vmem>>, vector<1x256xf32>
    tpu.vector_store %arg4[%c0_9, %c0_10], %24 {strides = array<i32>} : memref<1x256xf32, #tpu.memory_space<vmem>>, vector<1x256xf32>,
    return
  }
  func.func @transform_0(%arg0: i32) -> (i32, i32) {
    %c0_i32 = arith.constant 0 : i32
    %c0_i32_0 = arith.constant 0 : i32
    return %c0_i32, %arg0 : i32, i32
  }
  func.func @transform_1(%arg0: i32) -> (i32, i32) {
    %c0_i32 = arith.constant 0 : i32
    %c0_i32_0 = arith.constant 0 : i32
    %c0_i32_1 = arith.constant 0 : i32
    return %c0_i32, %c0_i32_0 : i32, i32
  }
  func.func @transform_2(%arg0: i32) -> (i32, i32) {
    %c0_i32 = arith.constant 0 : i32
    %c0_i32_0 = arith.constant 0 : i32
    %c0_i32_1 = arith.constant 0 : i32
    return %c0_i32, %c0_i32_0 : i32, i32
  }
  func.func @transform_3(%arg0: i32) -> (i32, i32) {
    %c0_i32 = arith.constant 0 : i32
    %c0_i32_0 = arith.constant 0 : i32
    return %c0_i32, %arg0 : i32, i32
  }
}

</mosaic_0001>

<llo_original>
// kernel: tpu_custom_call.1
$region0: #{tpu_custom_call.1}
  #allocation0 [shape = 'u32[]', space=smem, size = 0x4, offset = 0x4, fixed_abs, tag = 'smem constant byte address 0x4 - core index']
  #allocation1 [shape = 'u32[144,128]{1,0:T(1,128)}', space=vmem, size = 0x12000, scoped, tag = 'internal scratch']
  %s0 = inlined_call_operand.vmem [shape: f32[4,512], index: 0, kind: input, shape index: {}]
  %s1 = inlined_call_operand.vmem [shape: f32[32,8], index: 1, kind: input, shape index: {}]
  %s2 = inlined_call_operand.vmem [shape: f32[32,1], index: 2, kind: input, shape index: {}]
  %s3 = inlined_call_operand.hbm [shape: f32[1,512], index: 3, kind: output, shape index: {}]
  %s4 = sld [smem:[#allocation0]]
  $region45: #{tpu_custom_call.1} parent=0
    _
  %s6 = ssub.s32 1, %s4
  %s7 = scalar_select 0, %s6, %s4
  $region1: #{tpu_custom_call.1} parent=0
    #allocation2 [shape = 'u8[2048]{0}', space=vmem, size = 0x800, scoped, tag = 'output window, operand 0']
    #allocation3 [shape = 's32[2]{0}', space=sflag, size = 0x8, scoped, tag = 'scoped memory for tpu_custom_call.1']
    %8 = vsyncpa [#allocation3], 0
    %s9 = scalar_lea.sflag [#allocation3], 1
    %10 = vsyncpa %s9, 0
    loop: start=0, step=1, limit=4
    $region2: #{tpu_custom_call.1} parent=1 // loop_pre_header
      _
    $region3: #{tpu_custom_call.1} parent=1 // loop_header
      %s12 = sphi 0, %s16
      %p13 = scmp.ge.s32.totalorder %s12, 4
      %s22 = sphi 0, %s24
      %s25 = sphi 0, %s22
      %s26 = sphi 0, %s25
      %s42 = sphi 0, %s26
      %s46 = sphi 0, %s46
      %s48 = sphi 0, %s46
      %s49 = sphi 0, %s48
      %s63 = sphi 0, %s49
      %s67 = sphi 0, %s67
      %s69 = sphi 0, %s67
      %s70 = sphi 0, %s69
      %s84 = sphi 0, %s70
      %s90 = sphi 0, %s92
      %s93 = sphi 0, %s90
      %s94 = sphi 0, %s93
      %s110 = sphi 0, %s94
    $region4: #{tpu_custom_call.1} parent=1 // loop_header_branch
      %15 = sbr.rel (%p13) target = $region8
    $region5: #{tpu_custom_call.1} parent=1 // loop_body
      %s17 = ssub.s32 %s12, 1
      %s18 = ssub.s32 %s12, 2
      %s19 = sadd.s32 %s12, 1
      %s20 = ssub.s32 %s12, %s19
      %p21 = scmp.eq.s32.totalorder %s20, 0
      %s23 = sadd.s32 %s22, 1
      %s24 = scalar_select %p21, %s22, %s23
      %p27 = pneg %p21
      %p28 = scmp.eq.s32.totalorder %s12, 1
      %p29 = por %p27, %p28
      %p30 = scmp.ne.s32.totalorder %s22, %s25
      %p31 = scmp.eq.s32.totalorder %s12, 0
      %p32 = por %p30, %p31
      %p33 = scmp.ne.s32.totalorder %s22, %s25
      %p34 = scmp.eq.s32.totalorder %s17, 1
      %p35 = por %p33, %p34
      %p36 = scmp.ne.s32.totalorder %s25, %s26
      %p37 = scmp.eq.s32.totalorder %s17, 0
      %p38 = por %p36, %p37
      %p39 = scmp.ne.s32.totalorder %s25, %s26
      %p40 = scmp.eq.s32.totalorder %s18, 1
      %p41 = por %p39, %p40
      %p43 = scmp.ne.s32.totalorder %s26, %s42
      %p44 = scmp.eq.s32.totalorder %s18, 0
      %p45 = por %p43, %p44
      %s47 = sadd.s32 %s46, 1
      %p50 = scmp.eq.s32.totalorder %s12, 1
      %p51 = scmp.ne.s32.totalorder %s46, %s48
      %p52 = scmp.eq.s32.totalorder %s12, 0
      %p53 = por %p51, %p52
      %p54 = scmp.ne.s32.totalorder %s46, %s48
      %p55 = scmp.eq.s32.totalorder %s17, 1
      %p56 = por %p54, %p55
      %p57 = scmp.ne.s32.totalorder %s48, %s49
      %p58 = scmp.eq.s32.totalorder %s17, 0
      %p59 = por %p57, %p58
      %p60 = scmp.ne.s32.totalorder %s48, %s49
      %p61 = scmp.eq.s32.totalorder %s18, 1
      %p62 = por %p60, %p61
      %p64 = scmp.ne.s32.totalorder %s49, %s63
      %p65 = scmp.eq.s32.totalorder %s18, 0
      %p66 = por %p64, %p65
      %s68 = sadd.s32 %s67, 1
      %p71 = scmp.eq.s32.totalorder %s12, 1
      %p72 = scmp.ne.s32.totalorder %s67, %s69
      %p73 = scmp.eq.s32.totalorder %s12, 0
      %p74 = por %p72, %p73
      %p75 = scmp.ne.s32.totalorder %s67, %s69
      %p76 = scmp.eq.s32.totalorder %s17, 1
      %p77 = por %p75, %p76
      %p78 = scmp.ne.s32.totalorder %s69, %s70
      %p79 = scmp.eq.s32.totalorder %s17, 0
      %p80 = por %p78, %p79
      %p81 = scmp.ne.s32.totalorder %s69, %s70
      %p82 = scmp.eq.s32.totalorder %s18, 1
      %p83 = por %p81, %p82
      %p85 = scmp.ne.s32.totalorder %s70, %s84
      %p86 = scmp.eq.s32.totalorder %s18, 0
      %p87 = por %p85, %p86
      %s88 = ssub.s32 %s12, %s19
      %p89 = scmp.eq.s32.totalorder %s88, 0
      %s91 = sadd.s32 %s90, 1
      %s92 = scalar_select %p89, %s90, %s91
      %p95 = pneg %p89
      %p96 = scmp.eq.s32.totalorder %s12, 1
      %p97 = por %p95, %p96
      %p98 = scmp.ne.s32.totalorder %s90, %s93
      %p99 = scmp.eq.s32.totalorder %s12, 0
      %p100 = por %p98, %p99
      %p101 = scmp.ne.s32.totalorder %s90, %s93
      %p102 = scmp.eq.s32.totalorder %s17, 1
      %p103 = por %p101, %p102
      %p104 = scmp.ne.s32.totalorder %s93, %s94
      %p105 = scmp.eq.s32.totalorder %s17, 0
      %p106 = por %p104, %p105
      %p107 = scmp.ne.s32.totalorder %s93, %s94
      %p108 = scmp.eq.s32.totalorder %s18, 1
      %p109 = por %p107, %p108
      %p111 = scmp.ne.s32.totalorder %s94, %s110
      %p112 = scmp.eq.s32.totalorder %s18, 0
      %p113 = por %p111, %p112
      %p114 = scmp.le.s32.totalorder 1, %s12
      %p115 = scmp.lt.s32.totalorder %s12, 3
      %p116 = pnand %p114, %p115
      %p117 = pneg %p116
      // Predicated region
      $region9: #{tpu_custom_call.1} parent=5 // pred_check
        _
      $region10: #{tpu_custom_call.1} parent=5 // pred_check_branch
        %119 = sbr.rel (%p116) target = $region12
      $region11: #{tpu_custom_call.1} parent=5 // pred_region
        %s120 = ssub.s32 %s12, 1
        // Predicated region
        $region13: #{tpu_custom_call.1} parent=11 // pred_check
          %p121 = pneg %p59
        $region14: #{tpu_custom_call.1} parent=11 // pred_check_branch
          %123 = sbr.rel (%p121) target = $region16
        $region15: #{tpu_custom_call.1} parent=11 // pred_region
          _
        $region16: #{tpu_custom_call.1} parent=11 // pred_fallthru
          _
        // Predicated region
        $region17: #{tpu_custom_call.1} parent=11 // pred_check
          %p124 = pneg %p80
        $region18: #{tpu_custom_call.1} parent=11 // pred_check_branch
          %126 = sbr.rel (%p124) target = $region20
        $region19: #{tpu_custom_call.1} parent=11 // pred_region
          _
        $region20: #{tpu_custom_call.1} parent=11 // pred_fallthru
          _
      $region12: #{tpu_custom_call.1} parent=5 // pred_fallthru
        _
      %p127 = scmp.lt.s32.totalorder %s12, 2
      // Predicated region
      $region21: #{tpu_custom_call.1} parent=5 // pred_check
        %p128 = pneg %p127
      $region22: #{tpu_custom_call.1} parent=5 // pred_check_branch
        %130 = sbr.rel (%p128) target = $region24
      $region23: #{tpu_custom_call.1} parent=5 // pred_region
        // Predicated region
        $region25: #{tpu_custom_call.1} parent=23 // pred_check
          %p131 = pneg %p32
        $region26: #{tpu_custom_call.1} parent=23 // pred_check_branch
          %133 = sbr.rel (%p131) target = $region28
        $region27: #{tpu_custom_call.1} parent=23 // pred_region
          %s134 = smul.u32 2, %s12
          %p135 = scmp.lt.s32.totalorder %s134, 3
          %s136 = scalar_select %p135, %s134, 3
          %s137 = smul.addr %s136, 4
          %s138 = scalar_lea.vmem %s0, %s137
          %s139 = smul.u32 2, %s12
        $region28: #{tpu_custom_call.1} parent=23 // pred_fallthru
          _
      $region24: #{tpu_custom_call.1} parent=5 // pred_fallthru
        _
      %p140 = scmp.le.s32.totalorder 1, %s12
      %p141 = scmp.lt.s32.totalorder %s12, 3
      %p142 = pnand %p140, %p141
      %p143 = pneg %p142
      // Predicated region
      $region29: #{tpu_custom_call.1} parent=5 // pred_check
        _
      $region30: #{tpu_custom_call.1} parent=5 // pred_check_branch
        %145 = sbr.rel (%p142) target = $region32
      $region31: #{tpu_custom_call.1} parent=5 // pred_region
        %s146 = ssub.s32 %s12, 1
        %s147 = smul.u32 2, %s17
        %p148 = scmp.lt.s32.totalorder %s147, 3
        %s149 = scalar_select %p148, %s147, 3
        %s150 = smul.addr %s149, 4
        %s151 = scalar_lea.vmem %s0, %s150
        %p152 = pneg %p38
        %p153 = pneg %p35
        %p154 = pneg %p59
        %p155 = pneg %p56
        %p156 = pneg %p80
        %p157 = pneg %p77
        %p158 = pneg %p106
        %p159 = pneg %p103
        %s160 = sand.u32 %s93, 1
        %s161 = scalar_lea.sflag [#allocation3], %s160
        %s162 = sand.u32 %s93, 1
        %s163 = smul.addr %s162, 2
        %s164 = scalar_lea.vmem [#allocation2], %s163
        %s165 = smul.u32 2, %s17
        %p166 = scmp.lt.s32.totalorder %s165, 3
        %s167 = scalar_select %p166, %s165, 3
        %s168 = smul.addr %s167, 4
        %s169 = scalar_lea.vmem %s0, %s168
        %s170 = smul.u32 2, %s17
        %s171 = smul.u32 2, %s17
        %v172 = vld [vmem:[%s169] sm:$0xff]
        %v173 = vld [vmem:[%s1] sm:$0xff]
        %v174 = vld [vmem:[%s1 + $0x8] sm:$0xff]
        %v175 = vld [vmem:[%s1 + $0x10] sm:$0xff]
        %v176 = vld [vmem:[%s1 + $0x18] sm:$0xff]
        %v177 = vld [vmem:[%s2] sm:$0xff]
        %v178 = vld [vmem:[%s2 + $0x8] sm:$0xff]
        %v179 = vld [vmem:[%s2 + $0x10] sm:$0xff]
        %v180 = vld [vmem:[%s2 + $0x18] sm:$0xff]
        %v181 = vmul.f32 %v172, %v172
        %v183 = vcombine.high %v181, %v181
        %v186 = vcombine.low %v172, %v172
        %vm188 = vcmask 1043456
        %v189 = vsel %vm188, %v181, %v186
        %v190 = vsel %vm188, %v183, %v172
        %192 = vset.pattern.permute.xlu0 0
        %193 = vperm.xlu0 %192, %v177
        %v194 = vpop.permute.xlu0 %193
        %197 = vset.pattern.permute.xlu0 0
        %198 = vperm.xlu0 %197, %v178
        %v199 = vpop.permute.xlu0 %198
        %202 = vset.pattern.permute.xlu0 0
        %203 = vperm.xlu0 %202, %v179
        %v204 = vpop.permute.xlu0 %203
        %207 = vset.pattern.permute.xlu0 0
        %208 = vperm.xlu0 %207, %v180
        %v209 = vpop.permute.xlu0 %208
        %vm211 = vcmask 64512
        %v213 = vsel %vm211, %v173, 0
        %v216 = vsel %vm211, %v174, 0
        %v219 = vsel %vm211, %v175, 0
        %v222 = vsel %vm211, %v176, 0
        %224 = vmatprep.subr.mxu0 %v190
        %225 = vmatpush1.msra.mxu0 %v189
        %226 = vmatprep.subr.mxu0 0.0
        %227 = vmatpush1.msra.mxu0 0.0
        %228 = vmatprep.subr.mxu0 0.0
        %229 = vmatpush1.msra.mxu0 0.0
        %230 = vmatprep.subr.mxu0 0.0
        %231 = vmatpush1.msra.mxu0 0.0
        %232 = vmatprep.subr.mxu0 0.0
        %233 = vmatpush1.msra.mxu0 0.0
        %234 = vmatprep.subr.mxu0 0.0
        %235 = vmatpush1.msra.mxu0 0.0
        %236 = vmatprep.subr.mxu0 0.0
        %237 = vmatpush1.msra.mxu0 0.0
        %238 = vmatprep.subr.mxu0 0.0
        %239 = vmatpush1.msra.mxu0 0.0
        %240 = vmatprep.subr.mxu0 0.0
        %241 = vmatpush1.msra.mxu0 0.0
        %242 = vmatprep.subr.mxu0 0.0
        %243 = vmatpush1.msra.mxu0 0.0
        %244 = vmatprep.subr.mxu0 0.0
        %245 = vmatpush1.msra.mxu0 0.0
        %246 = vmatprep.subr.mxu0 0.0
        %247 = vmatpush1.msra.mxu0 0.0
        %248 = vmatprep.subr.mxu0 0.0
        %249 = vmatpush1.msra.mxu0 0.0
        %250 = vmatprep.subr.mxu0 0.0
        %251 = vmatpush1.msra.mxu0 0.0
        %252 = vmatprep.subr.mxu0 0.0
        %253 = vmatpush1.msra.mxu0 0.0
        %254 = vmatprep.subr.mxu0 0.0
        %255 = vmatpush1.msra.mxu0 0.0
        %256 = vmatprep.subr.mxu0 0.0
        %257 = vmatpush1.msra.mxu0 0.0
        %258 = vmatprep.subr.mxu0 0.0
        %259 = vmatpush1.msra.mxu0 0.0
        %260 = vmatprep.subr.mxu0 0.0
        %261 = vmatpush1.msra.mxu0 0.0
        %262 = vmatprep.subr.mxu0 0.0
        %263 = vmatpush1.msra.mxu0 0.0
        %264 = vmatprep.subr.mxu0 0.0
        %265 = vmatpush1.msra.mxu0 0.0
        %266 = vmatprep.subr.mxu0 0.0
        %267 = vmatpush1.msra.mxu0 0.0
        %268 = vmatprep.subr.mxu0 0.0
        %269 = vmatpush1.msra.mxu0 0.0
        %270 = vmatprep.subr.mxu0 0.0
        %271 = vmatpush1.msra.mxu0 0.0
        %272 = vmatprep.subr.mxu0 0.0
        %273 = vmatpush1.msra.mxu0 0.0
        %274 = vmatprep.subr.mxu0 0.0
        %275 = vmatpush1.msra.mxu0 0.0
        %276 = vmatprep.subr.mxu0 0.0
        %277 = vmatpush1.msra.mxu0 0.0
        %278 = vmatprep.subr.mxu0 0.0
        %279 = vmatpush1.msra.mxu0 0.0
        %280 = vmatprep.subr.mxu0 0.0
        %281 = vmatpush1.msra.mxu0 0.0
        %282 = vmatprep.subr.mxu0 0.0
        %283 = vmatpush1.msra.mxu0 0.0
        %284 = vmatprep.subr.mxu0 0.0
        %285 = vmatpush1.msra.mxu0 0.0
        %286 = vmatprep.subr.mxu0 0.0
        %287 = vmatpush1.msra.mxu0 0.0
        %288 = vmatprep.mubr.f32.mxu0 0.0
        %289 = vmatmul.mubr.f32.gmra.mrb[0].mxu0 %v213
        %v290 = vpop.f32.mrb[0].mxu0
        %v291 = vadd.f32 %v194, %v290
        %v292 = vpop.f32.mrb[0].mxu0
        %v293 = vadd.f32 %v194, %v292
        %294 = vmatprep.mubr.f32.mxu0 0.0
        %295 = vmatmul.mubr.f32.gmra.mrb[0].mxu0 %v216
        %v296 = vpop.f32.mrb[0].mxu0
        %v297 = vadd.f32 %v199, %v296
        %v298 = vpop.f32.mrb[0].mxu0
        %v299 = vadd.f32 %v199, %v298
        %300 = vmatprep.mubr.f32.mxu0 0.0
        %301 = vmatmul.mubr.f32.gmra.mrb[0].mxu0 %v219
        %v302 = vpop.f32.mrb[0].mxu0
        %v303 = vadd.f32 %v204, %v302
        %v304 = vpop.f32.mrb[0].mxu0
        %v305 = vadd.f32 %v204, %v304
        %306 = vmatprep.mubr.f32.mxu0 0.0
        %307 = vmatmul.mubr.f32.gmra.mrb[0].mxu0 %v222
        %v308 = vpop.f32.mrb[0].mxu0
        %v309 = vadd.f32 %v209, %v308
        %v310 = vpop.f32.mrb[0].mxu0
        %v311 = vadd.f32 %v209, %v310
        %312 = vdwg.mxu0
        %v313 = vmul.f32 %v291, 1.442695
        %v314 = vpow.pop %v313
        %v315 = vmul.f32 %v293, 1.442695
        %v316 = vpow.pop %v315
        %v317 = vmul.f32 %v297, 1.442695
        %v318 = vpow.pop %v317
        %v319 = vmul.f32 %v299, 1.442695
        %v320 = vpow.pop %v319
        %v321 = vadd.f32 %v314, %v318
        %v322 = vrot.slane %v321, 4
        %v323 = vadd.f32 %v321, %v322
        %v324 = vrot.slane %v323, 2
        %v325 = vadd.f32 %v323, %v324
        %v326 = vrot.slane %v325, 1
        %v327 = vadd.f32 %v325, %v326
        %v328 = vadd.f32 %v316, %v320
        %v329 = vrot.slane %v328, 4
        %v330 = vadd.f32 %v328, %v329
        %v331 = vrot.slane %v330, 2
        %v332 = vadd.f32 %v330, %v331
        %v333 = vrot.slane %v332, 1
        %v334 = vadd.f32 %v332, %v333
        %v335 = vmul.f32 %v314, %v303
        %v336 = vmul.f32 %v316, %v305
        %v337 = vmul.f32 %v318, %v309
        %v338 = vmul.f32 %v320, %v311
        %v339 = vadd.f32 %v335, %v337
        %v340 = vrot.slane %v339, 4
        %v341 = vadd.f32 %v339, %v340
        %v342 = vrot.slane %v341, 2
        %v343 = vadd.f32 %v341, %v342
        %v344 = vrot.slane %v343, 1
        %v345 = vadd.f32 %v343, %v344
        %v346 = vadd.f32 %v336, %v338
        %v347 = vrot.slane %v346, 4
        %v348 = vadd.f32 %v346, %v347
        %v349 = vrot.slane %v348, 2
        %v350 = vadd.f32 %v348, %v349
        %v351 = vrot.slane %v350, 1
        %v352 = vadd.f32 %v350, %v351
        %v353 = vadd.f32 %v327, 1e-08
        %v354 = vadd.f32 %v334, 1e-08
        %v355 = vrcp.pop %v353
        %v356 = vrcp.pop %v354
        %v357 = vmul.f32 %v345, %v355
        %v358 = vmul.f32 %v352, %v356
        %v359 = vxor.u32 %v357, 2147483648
        %v360 = vxor.u32 %v358, 2147483648
        %v361 = vmul.f32 %v359, 1.442695
        %v362 = vpow.pop %v361
        %v363 = vmul.f32 %v360, 1.442695
        %v364 = vpow.pop %v363
        %v365 = vadd.f32 %v362, 1.0
        %v366 = vadd.f32 %v364, 1.0
        %v367 = vrcp.pop %v365
        %v368 = vmul.f32 1.0, %v367
        %v369 = vrcp.pop %v366
        %v370 = vmul.f32 1.0, %v369
        %v373 = vcombine.low %v368, %v370
        %v375 = vunpack.c.l.s4 1966171168
        %v376 = vunpack.c.0.s8 %v375
        %v377 = vlaneseq
        %v378 = vshrl.u32 %v377, 7
        %v379 = vsub.s32 %v376, %v378
        %v380 = vrot.slane %v373, %v379
        %v382 = vunpack.c.l.s4 1966171168
        %v383 = vunpack.c.0.s8 %v382
        %v384 = vlaneseq
        %v385 = vshrl.u32 %v384, 7
        %v386 = vsub.s32 %v383, %v385
        %v387 = vrot.slane %v380, %v386
        %v389 = vlaneseq
        %vm390 = vcmp.ge.s32.totalorder %v389, 0
        %vm391 = vcmp.lt.s32.totalorder %v389, 256
        %vm392 = vmand %vm390, %vm391
        %393 = vst.msk [vmem:[%s164] sm:$0x3] %vm392, %v387
        %s394 = sand.u32 %s93, 1
        %s395 = scalar_lea.sflag [#allocation3], %s394
        %s396 = sand.u32 %s93, 1
        %s397 = smul.addr %s396, 2
        %s398 = scalar_lea.vmem [#allocation2], %s397
        // Predicated region
        $region33: #{tpu_custom_call.1} parent=31 // pred_check
          %p399 = pneg %p103
        $region34: #{tpu_custom_call.1} parent=31 // pred_check_branch
          %401 = sbr.rel (%p399) target = $region36
        $region35: #{tpu_custom_call.1} parent=31 // pred_region
          %s402 = smul.u32 2, %s17
          %s404 = ssub.s32 32, 32
          %405 = vsyncadd %s395, %s404
          %s406 = smul.addr %s402, 16
          %s407 = scalar_lea.hbm %s3, %s406
          %s409 = sshll.u32 %s398, 4
          %s410 = int_to_ptr.vmem [resolvable:$true] %s409
          %412 = dma.vmem_to_hbm [thread:$0]  %s410, 32, %s407, %s395
        $region36: #{tpu_custom_call.1} parent=31 // pred_fallthru
          _
      $region32: #{tpu_custom_call.1} parent=5 // pred_fallthru
        _
      %p413 = scmp.le.s32.totalorder 2, %s12
      // Predicated region
      $region37: #{tpu_custom_call.1} parent=5 // pred_check
        %p414 = pneg %p413
      $region38: #{tpu_custom_call.1} parent=5 // pred_check_branch
        %416 = sbr.rel (%p414) target = $region40
      $region39: #{tpu_custom_call.1} parent=5 // pred_region
        %s417 = ssub.s32 %s12, 2
        // Predicated region
        $region41: #{tpu_custom_call.1} parent=39 // pred_check
          %p418 = pneg %p109
        $region42: #{tpu_custom_call.1} parent=39 // pred_check_branch
          %420 = sbr.rel (%p418) target = $region44
        $region43: #{tpu_custom_call.1} parent=39 // pred_region
          %s421 = sand.u32 %s94, 1
          %s422 = scalar_lea.sflag [#allocation3], %s421
          %s423 = sand.u32 %s94, 1
          %s424 = smul.addr %s423, 2
          %s425 = scalar_lea.vmem [#allocation2], %s424
          %426 = dma.done %s422, 32
        $region44: #{tpu_custom_call.1} parent=39 // pred_fallthru
          _
      $region40: #{tpu_custom_call.1} parent=5 // pred_fallthru
        _
    $region6: #{tpu_custom_call.1} parent=1 // loop_footer
      %s16 = sadd.s32 1, %s12
    $region7: #{tpu_custom_call.1} parent=1 // loop_footer_branch
      %11 = sbr.rel target = $region3
    $region8: #{tpu_custom_call.1} parent=1 // loop_exit
      _
    %427 = vsyncpa [#allocation3], 1
    %s428 = scalar_lea.sflag [#allocation3], 1
    %429 = vsyncpa %s428, 1

</llo_original>
